<compile_context>
chip_gen: v7x
topology: tpu7x:2x2x1
jax: 0.10.0
libtpu: 0.0.40
codegen_flags: <defaults>
</compile_context>

<pallas_src>
import jax
import jax.numpy as jnp
from jax.experimental import pallas as pl
from jax.experimental.pallas import tpu as pltpu

EPS = 1e-5


def _round_up(x, m):
    return (x + m - 1) // m * m


def _vmem_limit_bytes():
    """Scoped-VMEM budget: ~half of physical (64 MiB on v5e/v6e, 32 MiB on v7x)."""
    cap = 128 * 1024 * 1024
    try:
        cap = int(getattr(pltpu.get_tpu_info(), "vmem_capacity_bytes", cap))
    except Exception:
        pass
    return max(16 * 1024 * 1024, min(cap // 2, 100 * 1024 * 1024))


# ---------------------------------------------------------------------------
# Pass 1: tiled matmul (im2col patches @ weight) with
#   grid = (core_split[parallel], m[arbitrary], k[arbitrary])
#   * f32 VMEM accumulator over the K axis,
#   * per-split partial per-channel sum / sum-of-squares,
#   * bf16 pre-BN activation written back to HBM.
# ---------------------------------------------------------------------------
def _matmul_stats_kernel(p_ref, w_ref, y_ref, stats_ref, acc_sc, sum_sc, sq_sc):
    i = pl.program_id(1)
    k = pl.program_id(2)
    ni = pl.num_programs(1)
    nk = pl.num_programs(2)

    @pl.when(jnp.logical_and(i == 0, k == 0))
    def _():
        sum_sc[...] = jnp.zeros_like(sum_sc)
        sq_sc[...] = jnp.zeros_like(sq_sc)

    @pl.when(k == 0)
    def _():
        acc_sc[...] = jnp.zeros_like(acc_sc)

    acc_sc[...] += jnp.dot(p_ref[...], w_ref[...],
                           preferred_element_type=jnp.float32)

    @pl.when(k == nk - 1)
    def _():
        y = acc_sc[...]
        # Per-channel stats from the f32 accumulator (zero-padded rows add 0).
        # The stored activation is bf16; the tiny stats/activation mismatch is
        # well inside the bf16-pipeline tolerance (BN re-normalizes anyway).
        sum_sc[...] += jnp.sum(y, axis=0, keepdims=True)
        sq_sc[...] += jnp.sum(y * y, axis=0, keepdims=True)
        y_ref[...] = y.astype(y_ref.dtype)

    @pl.when(jnp.logical_and(i == ni - 1, k == nk - 1))
    def _():
        stats_ref[:, 0:1, :] = sum_sc[...].reshape(1, 1, -1)
        stats_ref[:, 1:2, :] = sq_sc[...].reshape(1, 1, -1)


# ---------------------------------------------------------------------------
# Pass 2: folded batch-norm affine  out = y * scale + shift   (HBM-bound).
# ---------------------------------------------------------------------------
def _normalize_kernel(y_ref, scale_ref, shift_ref, o_ref):
    y = y_ref[...].astype(jnp.float32)
    o_ref[...] = (y * scale_ref[...] + shift_ref[...]).astype(o_ref.dtype)


def _im2col_nchw_bf16(x, kh, kw, stride):
    """(N, C, H, W) -> bf16 patches (N*OH*OW, C*kh*kw); K ordering (c, kh, kw)
    matches the PyTorch conv-weight flatten (Cout, Cin*KH*KW)."""
    # TODO(synk): replace this host-side im2col with in-kernel shifted-tap
    #             accumulation (Element-indexed overlapping input windows) to
    #             cut the ~KH*KW x duplicated input HBM traffic.
    x = x.astype(jnp.bfloat16)          # cast BEFORE the stack/transpose copy
    N, C, H, W = x.shape
    OH = (H - kh) // stride + 1
    OW = (W - kw) // stride + 1
    cols = []
    for i in range(kh):
        for j in range(kw):
            cols.append(x[:, :, i:i + OH * stride:stride, j:j + OW * stride:stride])
    p = jnp.stack(cols, axis=2)                                 # (N, C, kh*kw, OH, OW)
    p = p.transpose(0, 3, 4, 1, 2).reshape(N * OH * OW, C * kh * kw)
    return p, OH, OW


def conv2d_n_forward(x, weight, gamma, beta, stride, *, tm=512, tk=None):
    """x: (N, Cin, H, W) f32; weight: (Cout, Cin, KH, KW); gamma/beta: (Cout,)."""
    N, Cin, H, W = x.shape
    Cout, _, KH, KW = weight.shape

    patches, OH, OW = _im2col_nchw_bf16(x, KH, KW, stride)      # (M, K) bf16
    M, K = patches.shape

    vmem_limit = _vmem_limit_bytes()

    # Lane / MXU friendly padding (128 multiples; see header for 256 note).
    C_pad = _round_up(Cout, 128)
    k128 = _round_up(K, 128)
    tk = min(1024, k128) if tk is None else _round_up(max(min(tk, k128), 128), 128)
    K_pad = _round_up(k128, tk)
    n_k = K_pad // tk

    # M tile: shrink until the pass-1 working set fits the scoped VMEM budget.
    def pass1_vmem(tm_):
        return (2 * tm_ * tk * 2        # patches block, double-buffered, bf16
                + 2 * tk * C_pad * 2    # weight block, double-buffered, bf16
                + 2 * tm_ * C_pad * 2   # bf16 y block, double-buffered
                + tm_ * C_pad * 4       # f32 accumulator scratch
                + 16 * C_pad * 4)       # stats output + scratch
    tm = min(_round_up(tm, 8), _round_up(M, 8))
    while tm > 64 and pass1_vmem(tm) > int(0.8 * vmem_limit):
        tm = _round_up(tm // 2, 8)

    # Leading "parallel" axis -> both TensorCores on v7x (per-split partial
    # stats); a harmless sequential outer loop on single-TC v5e/v6e.
    num_split = 2 if M > tm else 1
    M_pad = _round_up(M, tm * num_split)
    n_m = M_pad // tm
    n_m_per = n_m // num_split

    p_pad = jnp.pad(patches, ((0, M_pad - M), (0, K_pad - K)))
    w_pad = jnp.pad(weight.reshape(Cout, K).T.astype(jnp.bfloat16),
                    ((0, K_pad - K), (0, C_pad - Cout)))

    y, stats = pl.pallas_call(
        _matmul_stats_kernel,
        out_shape=(jax.ShapeDtypeStruct((M_pad, C_pad), jnp.bfloat16),
                   jax.ShapeDtypeStruct((num_split, 2, C_pad), jnp.float32)),
        grid=(num_split, n_m_per, n_k),
        in_specs=[pl.BlockSpec((tm, tk), lambda c, i, k: (c * n_m_per + i, k)),
                  pl.BlockSpec((tk, C_pad), lambda c, i, k: (k, 0))],
        out_specs=(pl.BlockSpec((tm, C_pad), lambda c, i, k: (c * n_m_per + i, 0)),
                   pl.BlockSpec((1, 2, C_pad), lambda c, i, k: (c, 0, 0))),
        scratch_shapes=[pltpu.VMEM((tm, C_pad), jnp.float32),
                        pltpu.VMEM((1, C_pad), jnp.float32),
                        pltpu.VMEM((1, C_pad), jnp.float32)],
        compiler_params=pltpu.CompilerParams(
            dimension_semantics=("parallel", "arbitrary", "arbitrary"),
            vmem_limit_bytes=vmem_limit),
        cost_estimate=pl.CostEstimate(
            flops=2 * M_pad * K_pad * C_pad,
            transcendentals=0,
            bytes_accessed=(M_pad * K_pad * 2 + num_split * K_pad * C_pad * 2
                            + M_pad * C_pad * 2)),
    )(p_pad, w_pad)

    # Fold BatchNorm (batch stats, biased variance, eps=1e-5) into scale/shift.
    # NOTE: E[x^2]-E[x]^2 in f32 can cancel for huge M / large activations;
    # the per-split partials help and max(.,0) guards the rsqrt.
    tot = jnp.sum(stats, axis=0)                                 # (2, C_pad)
    mean = tot[0] / M
    var = jnp.maximum(tot[1] / M - mean * mean, 0.0)
    g_pad = jnp.zeros((C_pad,), jnp.float32).at[:Cout].set(gamma.astype(jnp.float32))
    b_pad = jnp.zeros((C_pad,), jnp.float32).at[:Cout].set(beta.astype(jnp.float32))
    scale = (g_pad * jax.lax.rsqrt(var + EPS)).reshape(1, C_pad)
    shift = (b_pad - mean * scale[0]).reshape(1, C_pad)

    # Pass 2 is pure HBM bandwidth -> pick a bigger, independent row tile that
    # still divides M_pad and fits the VMEM budget.
    tm2 = tm
    for f in (16, 8, 4, 2):
        cand = tm * f
        if n_m % f == 0 and cand <= 4096 and \
                12 * cand * C_pad <= int(0.8 * vmem_limit):
            tm2 = cand
            break

    out_flat = pl.pallas_call(
        _normalize_kernel,
        out_shape=jax.ShapeDtypeStruct((M_pad, C_pad), jnp.float32),
        grid=(M_pad // tm2,),
        in_specs=[pl.BlockSpec((tm2, C_pad), lambda i: (i, 0)),
                  pl.BlockSpec((1, C_pad), lambda i: (0, 0)),
                  pl.BlockSpec((1, C_pad), lambda i: (0, 0))],
        out_specs=pl.BlockSpec((tm2, C_pad), lambda i: (i, 0)),
        compiler_params=pltpu.CompilerParams(
            dimension_semantics=("parallel",),
            vmem_limit_bytes=vmem_limit),
    )(y, scale, shift)

    # (M, Cout) -> (N, OH, OW, Cout) -> NCHW (matches the PyTorch module).
    # TODO(synk): emit NHWC / bf16 directly from pass 2 if the downstream
    #             consumer allows, to drop this extra HBM-bound transpose.
    out = out_flat[:M, :Cout].reshape(N, OH, OW, Cout).transpose(0, 3, 1, 2)
    return out


def _reference(x, weight, gamma, beta, stride):
    """Pure-JAX f32 reference (conv + batchnorm with batch stats)."""
    y = jax.lax.conv_general_dilated(
        x, weight, window_strides=(stride, stride), padding="VALID",
        dimension_numbers=("NCHW", "OIHW", "NCHW"))
    mean = jnp.mean(y, axis=(0, 2, 3), keepdims=True)
    var = jnp.mean((y - mean) ** 2, axis=(0, 2, 3), keepdims=True)
    return (y - mean) * jax.lax.rsqrt(var + EPS) * gamma.reshape(1, -1, 1, 1) \
        + beta.reshape(1, -1, 1, 1)


if __name__ == "__main__":
    key = jax.random.PRNGKey(0)

    def run_case(case_id, N, Cin, H, W, Cout, ksize, stride, *, tm, tk=None,
                 nontrivial_affine=False):
        kx, kw2 = jax.random.split(jax.random.fold_in(key, case_id))
        x = jax.random.normal(kx, (N, Cin, H, W), dtype=jnp.float32)
        # Kaiming-uniform-like conv init; BN gamma/beta per flag.
        fan_in = Cin * ksize * ksize
        bound = 1.0 / (fan_in ** 0.5)
        weight = jax.random.uniform(kw2, (Cout, Cin, ksize, ksize),
                                    minval=-bound, maxval=bound,
                                    dtype=jnp.float32)
        if nontrivial_affine:
            gamma = 1.0 + 0.1 * jnp.linspace(-1.0, 1.0, Cout, dtype=jnp.float32)
            beta = 0.1 * jnp.linspace(-1.0, 1.0, Cout, dtype=jnp.float32)
        else:
            gamma = jnp.ones((Cout,), jnp.float32)
            beta = jnp.zeros((Cout,), jnp.float32)

        out = conv2d_n_forward(x, weight, gamma, beta, stride, tm=tm, tk=tk)
        out = jax.block_until_ready(out)
        ref = _reference(x, weight, gamma, beta, stride)
        assert out.shape == ref.shape, (out.shape, ref.shape)
        err = float(jnp.max(jnp.abs(out - ref)))
        # bf16 MXU operands + bf16 intermediate (f32 accumulation / BN math).
        assert err < 6e-2, (case_id, err)

    # Module-typical small shape; tm=64 keeps it multi-tile so the cross-tile
    # and cross-core-split stat accumulation paths are exercised.
    run_case(0, 2, 4, 16, 16, 8, 3, 2, tm=64)
    # Larger Cin with a forced small K tile exercises the K-axis accumulator
    # path and a non-trivial BN affine.
    run_case(1, 2, 16, 16, 16, 8, 3, 2, tm=64, tk=128, nontrivial_affine=True)

    print("KERNEL_OK")
</pallas_src>

<mosaic_0001>
module attributes {stable_mosaic.version = 11 : i64} {
  func.func @_matmul_stats_kernel(%arg0: i32, %arg1: i32, %arg2: i32, %arg3: memref<64x128xbf16, #tpu.memory_space<vmem>>, %arg4: memref<128x128xbf16, #tpu.memory_space<vmem>>, %arg5: memref<64x128xbf16, #tpu.memory_space<vmem>>, %arg6: memref<1x2x128xf32, #tpu.memory_space<vmem>>, %arg7: memref<64x128xf32, #tpu.memory_space<vmem>>, %arg8: memref<1x128xf32, #tpu.memory_space<vmem>>, %arg9: memref<1x128xf32, #tpu.memory_space<vmem>>) attributes {dimension_semantics = [#tpu.dimension_semantics<parallel>, #tpu.dimension_semantics<arbitrary>, #tpu.dimension_semantics<arbitrary>], iteration_bounds = array<i64: 2, 1, 1>, scalar_prefetch = 0 : i64, scratch_operands = 3 : i64, tpu.core_type = #tpu.core_type<tc>, window_params = [{transform_indices = @transform_0, window_bounds = array<i64: 64, 128>}, {transform_indices = @transform_1, window_bounds = array<i64: 128, 128>}, {transform_indices = @transform_2, window_bounds = array<i64: 64, 128>}, {transform_indices = @transform_3, window_bounds = array<i64: 1, 2, 128>}]} {
    %c0_i32 = arith.constant 0 : i32
    %0 = arith.cmpi eq, %arg1, %c0_i32 : i32
    %c0_i32_0 = arith.constant 0 : i32
    %1 = arith.cmpi eq, %arg2, %c0_i32_0 : i32
    %2 = arith.andi %0, %1 : i1
    %3 = arith.extui %2 : i1 to i32
    %c0_i32_1 = arith.constant 0 : i32
    %4 = arith.cmpi ne, %3, %c0_i32_1 : i32
    scf.if %4 {
      %cst_16 = arith.constant 0.000000e+00 : f32
      %22 = vector.broadcast %cst_16 : f32 to vector<1x128xf32>
      %c0_17 = arith.constant 0 : index
      %c0_18 = arith.constant 0 : index
      %23 = vector.load %arg8[%c0_17, %c0_18] : memref<1x128xf32, #tpu.memory_space<vmem>>, vector<1x128xf32>
      tpu.vector_store %arg8[%c0_17, %c0_18], %22 {strides = array<i32>} : memref<1x128xf32, #tpu.memory_space<vmem>>, vector<1x128xf32>,
      %cst_19 = arith.constant 0.000000e+00 : f32
      %24 = vector.broadcast %cst_19 : f32 to vector<1x128xf32>
      %c0_20 = arith.constant 0 : index
      %c0_21 = arith.constant 0 : index
      %25 = vector.load %arg9[%c0_20, %c0_21] : memref<1x128xf32, #tpu.memory_space<vmem>>, vector<1x128xf32>
      tpu.vector_store %arg9[%c0_20, %c0_21], %24 {strides = array<i32>} : memref<1x128xf32, #tpu.memory_space<vmem>>, vector<1x128xf32>,
    } else {
    }
    %c0_i32_2 = arith.constant 0 : i32
    %5 = arith.cmpi eq, %arg2, %c0_i32_2 : i32
    %6 = arith.extui %5 : i1 to i32
    %c0_i32_3 = arith.constant 0 : i32
    %7 = arith.cmpi ne, %6, %c0_i32_3 : i32
    scf.if %7 {
      %cst_16 = arith.constant 0.000000e+00 : f32
      %22 = vector.broadcast %cst_16 : f32 to vector<64x128xf32>
      %c0_17 = arith.constant 0 : index
      %c0_18 = arith.constant 0 : index
      %23 = vector.load %arg7[%c0_17, %c0_18] : memref<64x128xf32, #tpu.memory_space<vmem>>, vector<64x128xf32>
      tpu.vector_store %arg7[%c0_17, %c0_18], %22 {strides = array<i32>} : memref<64x128xf32, #tpu.memory_space<vmem>>, vector<64x128xf32>,
    } else {
    }
    %c0 = arith.constant 0 : index
    %c0_4 = arith.constant 0 : index
    %8 = vector.load %arg7[%c0, %c0_4] : memref<64x128xf32, #tpu.memory_space<vmem>>, vector<64x128xf32>
    %c0_5 = arith.constant 0 : index
    %c0_6 = arith.constant 0 : index
    %9 = vector.load %arg3[%c0_5, %c0_6] : memref<64x128xbf16, #tpu.memory_space<vmem>>, vector<64x128xbf16>
    %c0_7 = arith.constant 0 : index
    %c0_8 = arith.constant 0 : index
    %10 = vector.load %arg4[%c0_7, %c0_8] : memref<128x128xbf16, #tpu.memory_space<vmem>>, vector<128x128xbf16>
    %cst = arith.constant dense<0.000000e+00> : vector<64x128xf32>
    %11 = tpu.matmul %9, %10, %cst {dimension_numbers = #tpu.dot_dimension_numbers<[1], [0], [0], [1], [0, 0, 1, 1], [], []>} : vector<64x128xbf16>, vector<128x128xbf16>, vector<64x128xf32> -> vector<64x128xf32>
    %12 = arith.addf %8, %11 : vector<64x128xf32>
    %c0_9 = arith.constant 0 : index
    %c0_10 = arith.constant 0 : index
    %13 = vector.load %arg7[%c0_9, %c0_10] : memref<64x128xf32, #tpu.memory_space<vmem>>, vector<64x128xf32>
    tpu.vector_store %arg7[%c0_9, %c0_10], %12 {strides = array<i32>} : memref<64x128xf32, #tpu.memory_space<vmem>>, vector<64x128xf32>,
    %c0_i32_11 = arith.constant 0 : i32
    %14 = arith.cmpi eq, %arg2, %c0_i32_11 : i32
    %15 = arith.extui %14 : i1 to i32
    %c0_i32_12 = arith.constant 0 : i32
    %16 = arith.cmpi ne, %15, %c0_i32_12 : i32
    scf.if %16 {
      %c0_16 = arith.constant 0 : index
      %c0_17 = arith.constant 0 : index
      %22 = vector.load %arg7[%c0_16, %c0_17] : memref<64x128xf32, #tpu.memory_space<vmem>>, vector<64x128xf32>
      %c0_18 = arith.constant 0 : index
      %c0_19 = arith.constant 0 : index
      %23 = vector.load %arg8[%c0_18, %c0_19] : memref<1x128xf32, #tpu.memory_space<vmem>>, vector<1x128xf32>
      %cst_20 = arith.constant dense<0.000000e+00> : vector<128xf32>
      %24 = vector.multi_reduction <add>, %22, %cst_20 [0] : vector<64x128xf32> to vector<128xf32>
      %25 = vector.shape_cast %24 : vector<128xf32> to vector<1x128xf32>
      %26 = arith.addf %23, %25 : vector<1x128xf32>
      %c0_21 = arith.constant 0 : index
      %c0_22 = arith.constant 0 : index
      %27 = vector.load %arg8[%c0_21, %c0_22] : memref<1x128xf32, #tpu.memory_space<vmem>>, vector<1x128xf32>
      tpu.vector_store %arg8[%c0_21, %c0_22], %26 {strides = array<i32>} : memref<1x128xf32, #tpu.memory_space<vmem>>, vector<1x128xf32>,
      %c0_23 = arith.constant 0 : index
      %c0_24 = arith.constant 0 : index
      %28 = vector.load %arg9[%c0_23, %c0_24] : memref<1x128xf32, #tpu.memory_space<vmem>>, vector<1x128xf32>
      %29 = arith.mulf %22, %22 : vector<64x128xf32>
      %cst_25 = arith.constant dense<0.000000e+00> : vector<128xf32>
      %30 = vector.multi_reduction <add>, %29, %cst_25 [0] : vector<64x128xf32> to vector<128xf32>
      %31 = vector.shape_cast %30 : vector<128xf32> to vector<1x128xf32>
      %32 = arith.addf %28, %31 : vector<1x128xf32>
      %c0_26 = arith.constant 0 : index
      %c0_27 = arith.constant 0 : index
      %33 = vector.load %arg9[%c0_26, %c0_27] : memref<1x128xf32, #tpu.memory_space<vmem>>, vector<1x128xf32>
      tpu.vector_store %arg9[%c0_26, %c0_27], %32 {strides = array<i32>} : memref<1x128xf32, #tpu.memory_space<vmem>>, vector<1x128xf32>,
      %34 = arith.truncf %22 : vector<64x128xf32> to vector<64x128xbf16>
      %c0_28 = arith.constant 0 : index
      %c0_29 = arith.constant 0 : index
      %35 = vector.load %arg5[%c0_28, %c0_29] : memref<64x128xbf16, #tpu.memory_space<vmem>>, vector<64x128xbf16>
      tpu.vector_store %arg5[%c0_28, %c0_29], %34 {strides = array<i32>} : memref<64x128xbf16, #tpu.memory_space<vmem>>, vector<64x128xbf16>,
    } else {
    }
    %c0_i32_13 = arith.constant 0 : i32
    %17 = arith.cmpi eq, %arg1, %c0_i32_13 : i32
    %c0_i32_14 = arith.constant 0 : i32
    %18 = arith.cmpi eq, %arg2, %c0_i32_14 : i32
    %19 = arith.andi %17, %18 : i1
    %20 = arith.extui %19 : i1 to i32
    %c0_i32_15 = arith.constant 0 : i32
    %21 = arith.cmpi ne, %20, %c0_i32_15 : i32
    scf.if %21 {
      %c0_16 = arith.constant 0 : index
      %c0_17 = arith.constant 0 : index
      %22 = vector.load %arg8[%c0_16, %c0_17] : memref<1x128xf32, #tpu.memory_space<vmem>>, vector<1x128xf32>
      %23 = vector.shape_cast %22 : vector<1x128xf32> to vector<1x1x128xf32>
      %c0_18 = arith.constant 0 : index
      %c0_19 = arith.constant 0 : index
      %c0_20 = arith.constant 0 : index
      %24 = vector.load %arg6[%c0_18, %c0_19, %c0_20] : memref<1x2x128xf32, #tpu.memory_space<vmem>>, vector<1x1x128xf32>
      tpu.vector_store %arg6[%c0_18, %c0_19, %c0_20], %23 {strides = array<i32>} : memref<1x2x128xf32, #tpu.memory_space<vmem>>, vector<1x1x128xf32>,
      %c0_21 = arith.constant 0 : index
      %c0_22 = arith.constant 0 : index
      %25 = vector.load %arg9[%c0_21, %c0_22] : memref<1x128xf32, #tpu.memory_space<vmem>>, vector<1x128xf32>
      %26 = vector.shape_cast %25 : vector<1x128xf32> to vector<1x1x128xf32>
      %c0_23 = arith.constant 0 : index
      %c1 = arith.constant 1 : index
      %c0_24 = arith.constant 0 : index
      %27 = vector.load %arg6[%c0_23, %c1, %c0_24] : memref<1x2x128xf32, #tpu.memory_space<vmem>>, vector<1x1x128xf32>
      tpu.vector_store %arg6[%c0_23, %c1, %c0_24], %26 {strides = array<i32>} : memref<1x2x128xf32, #tpu.memory_space<vmem>>, vector<1x1x128xf32>,
    } else {
    }
    return
  }
  func.func @transform_0(%arg0: i32, %arg1: i32, %arg2: i32) -> (i32, i32) {
    %c1_i32 = arith.constant 1 : i32
    %0 = arith.muli %arg0, %c1_i32 : i32
    %1 = arith.addi %0, %arg1 : i32
    %c0_i32 = arith.constant 0 : i32
    return %1, %arg2 : i32, i32
  }
  func.func @transform_1(%arg0: i32, %arg1: i32, %arg2: i32) -> (i32, i32) {
    %c0_i32 = arith.constant 0 : i32
    %c0_i32_0 = arith.constant 0 : i32
    return %arg2, %c0_i32 : i32, i32
  }
  func.func @transform_2(%arg0: i32, %arg1: i32, %arg2: i32) -> (i32, i32) {
    %c1_i32 = arith.constant 1 : i32
    %0 = arith.muli %arg0, %c1_i32 : i32
    %1 = arith.addi %0, %arg1 : i32
    %c0_i32 = arith.constant 0 : i32
    %c0_i32_0 = arith.constant 0 : i32
    return %1, %c0_i32 : i32, i32
  }
  func.func @transform_3(%arg0: i32, %arg1: i32, %arg2: i32) -> (i32, i32, i32) {
    %c0_i32 = arith.constant 0 : i32
    %c0_i32_0 = arith.constant 0 : i32
    %c0_i32_1 = arith.constant 0 : i32
    return %arg0, %c0_i32, %c0_i32_0 : i32, i32, i32
  }
}

</mosaic_0001>

<llo_original>
// kernel: tpu_custom_call.1
$region0: #{tpu_custom_call.1}
  #allocation0 [shape = 'u32[]', space=smem, size = 0x4, offset = 0x4, fixed_abs, tag = 'smem constant byte address 0x4 - core index']
  #allocation1 [shape = 'u32[144,128]{1,0:T(1,128)}', space=vmem, size = 0x12000, scoped, tag = 'internal scratch']
  #allocation2 [shape = 'f32[64,128]{1,0:T(8,128)}', space=vmem, size = 0x8000, scoped, tag = 'scratch operand']
  #allocation3 [shape = 'f32[1,128]{1,0:T(1,128)}', space=vmem, size = 0x200, scoped, tag = 'scratch operand']
  #allocation4 [shape = 'f32[1,128]{1,0:T(1,128)}', space=vmem, size = 0x200, scoped, tag = 'scratch operand']
  %s0 = inlined_call_operand.hbm [shape: bf16[128,128], index: 0, kind: input, shape index: {}]
  %s1 = inlined_call_operand.hbm [shape: bf16[128,128], index: 1, kind: input, shape index: {}]
  %s2 = inlined_call_operand.hbm [shape: bf16[128,128], index: 2, kind: output, shape index: {0}]
  %s3 = inlined_call_operand.hbm [shape: f32[2,2,128], index: 3, kind: output, shape index: {1}]
  %4 = xla_tuple %s2, %s3
  %s5 = sld [smem:[#allocation0]]
  $region73: #{tpu_custom_call.1} parent=0
    _
  %s7 = ssub.s32 1, %s5
  %s8 = scalar_select 0, %s7, %s5
  $region1: #{tpu_custom_call.1} parent=0
    #allocation5 [shape = 'u8[32768]{0}', space=vmem, size = 0x8000, scoped, tag = 'input window, operand 0']
    #allocation6 [shape = 's32[2]{0}', space=sflag, size = 0x8, scoped, tag = 'scoped memory for tpu_custom_call.1']
    #allocation7 [shape = 's32[2]{0}', space=sflag, size = 0x8, scoped, tag = 'scoped memory for tpu_custom_call.1']
    #allocation8 [shape = 'u8[32768]{0}', space=vmem, size = 0x8000, scoped, tag = 'input window, operand 1, single buffered']
    #allocation9 [shape = 's32[1]{0}', space=sflag, size = 0x4, scoped, tag = 'scoped memory for tpu_custom_call.1']
    #allocation10 [shape = 'u8[32768]{0}', space=vmem, size = 0x8000, scoped, tag = 'output window, operand 0']
    #allocation11 [shape = 'u8[2048]{0}', space=vmem, size = 0x800, scoped, tag = 'output window, operand 1']
    #allocation12 [shape = 's32[2]{0}', space=sflag, size = 0x8, scoped, tag = 'scoped memory for tpu_custom_call.1']
    %9 = vsyncpa [#allocation6], 0
    %s10 = scalar_lea.sflag [#allocation6], 1
    %11 = vsyncpa %s10, 0
    %12 = vsyncpa [#allocation9], 0
    %13 = vsyncpa [#allocation7], 0
    %s14 = scalar_lea.sflag [#allocation7], 1
    %15 = vsyncpa %s14, 0
    %16 = vsyncpa [#allocation12], 0
    %s17 = scalar_lea.sflag [#allocation12], 1
    %18 = vsyncpa %s17, 0
    loop: start=0, step=1, limit=4
    $region2: #{tpu_custom_call.1} parent=1 // loop_pre_header
      _
    $region3: #{tpu_custom_call.1} parent=1 // loop_header
      %s20 = sphi 0, %s24
      %p21 = scmp.ge.s32.totalorder %s20, 4
      %s27 = sphi 0, %s46
      %s28 = sphi 0, %s42
      %s29 = sphi 0, %s38
      %s30 = sphi 0, %s27
      %s31 = sphi 0, %s28
      %s32 = sphi 0, %s29
      %s33 = sphi 0, %s30
      %s34 = sphi 0, %s31
      %s35 = sphi 0, %s32
      %s53 = sphi 0, %s55
      %s56 = sphi 0, %s53
      %s57 = sphi 0, %s56
      %s73 = sphi 0, %s57
      %s79 = sphi 0, %s81
      %s82 = sphi 0, %s79
      %s83 = sphi 0, %s82
      %s99 = sphi 0, %s83
      %s107 = sphi 0, %s109
      %s110 = sphi 0, %s107
      %s111 = sphi 0, %s110
      %s127 = sphi 0, %s111
      %s133 = sphi 0, %s135
      %s136 = sphi 0, %s133
      %s137 = sphi 0, %s136
      %s153 = sphi 0, %s137
    $region4: #{tpu_custom_call.1} parent=1 // loop_header_branch
      %23 = sbr.rel (%p21) target = $region8
    $region5: #{tpu_custom_call.1} parent=1 // loop_body
      %s25 = ssub.s32 %s20, 1
      %s26 = ssub.s32 %s20, 2
      %s36 = sadd.s32 1, %s29
      %p37 = scmp.ge.s32.totalorder %s36, 1
      %s38 = scalar_select %p37, 0, %s36
      %s39 = sadd.s32 1, %s28
      %s40 = scalar_select %p37, %s39, %s28
      %p41 = scmp.ge.s32.totalorder %s40, 1
      %s42 = scalar_select %p41, 0, %s40
      %s43 = sadd.s32 1, %s27
      %s44 = scalar_select %p41, %s43, %s27
      %p45 = scmp.ge.s32.totalorder %s44, 2
      %s46 = scalar_select %p45, 0, %s44
      %s47 = sadd.s32 %s27, %s28
      %s48 = sadd.s32 %s46, %s42
      %s49 = ssub.s32 %s47, %s48
      %s50 = ssub.s32 %s29, %s38
      %s51 = sor.u32 %s49, %s50
      %p52 = scmp.eq.s32.totalorder %s51, 0
      %s54 = sadd.s32 %s53, 1
      %s55 = scalar_select %p52, %s53, %s54
      %p58 = pneg %p52
      %p59 = scmp.eq.s32.totalorder %s20, 1
      %p60 = por %p58, %p59
      %p61 = scmp.ne.s32.totalorder %s53, %s56
      %p62 = scmp.eq.s32.totalorder %s20, 0
      %p63 = por %p61, %p62
      %p64 = scmp.ne.s32.totalorder %s53, %s56
      %p65 = scmp.eq.s32.totalorder %s25, 1
      %p66 = por %p64, %p65
      %p67 = scmp.ne.s32.totalorder %s56, %s57
      %p68 = scmp.eq.s32.totalorder %s25, 0
      %p69 = por %p67, %p68
      %p70 = scmp.ne.s32.totalorder %s56, %s57
      %p71 = scmp.eq.s32.totalorder %s26, 1
      %p72 = por %p70, %p71
      %p74 = scmp.ne.s32.totalorder %s57, %s73
      %p75 = scmp.eq.s32.totalorder %s26, 0
      %p76 = por %p74, %p75
      %s77 = ssub.s32 %s29, %s38
      %p78 = scmp.eq.s32.totalorder %s77, 0
      %s80 = sadd.s32 %s79, 1
      %s81 = scalar_select %p78, %s79, %s80
      %p84 = pneg %p78
      %p85 = scmp.eq.s32.totalorder %s20, 1
      %p86 = por %p84, %p85
      %p87 = scmp.ne.s32.totalorder %s79, %s82
      %p88 = scmp.eq.s32.totalorder %s20, 0
      %p89 = por %p87, %p88
      %p90 = scmp.ne.s32.totalorder %s79, %s82
      %p91 = scmp.eq.s32.totalorder %s25, 1
      %p92 = por %p90, %p91
      %p93 = scmp.ne.s32.totalorder %s82, %s83
      %p94 = scmp.eq.s32.totalorder %s25, 0
      %p95 = por %p93, %p94
      %p96 = scmp.ne.s32.totalorder %s82, %s83
      %p97 = scmp.eq.s32.totalorder %s26, 1
      %p98 = por %p96, %p97
      %p100 = scmp.ne.s32.totalorder %s83, %s99
      %p101 = scmp.eq.s32.totalorder %s26, 0
      %p102 = por %p100, %p101
      %s103 = sadd.s32 %s27, %s28
      %s104 = sadd.s32 %s46, %s42
      %s105 = ssub.s32 %s103, %s104
      %p106 = scmp.eq.s32.totalorder %s105, 0
      %s108 = sadd.s32 %s107, 1
      %s109 = scalar_select %p106, %s107, %s108
      %p112 = pneg %p106
      %p113 = scmp.eq.s32.totalorder %s20, 1
      %p114 = por %p112, %p113
      %p115 = scmp.ne.s32.totalorder %s107, %s110
      %p116 = scmp.eq.s32.totalorder %s20, 0
      %p117 = por %p115, %p116
      %p118 = scmp.ne.s32.totalorder %s107, %s110
      %p119 = scmp.eq.s32.totalorder %s25, 1
      %p120 = por %p118, %p119
      %p121 = scmp.ne.s32.totalorder %s110, %s111
      %p122 = scmp.eq.s32.totalorder %s25, 0
      %p123 = por %p121, %p122
      %p124 = scmp.ne.s32.totalorder %s110, %s111
      %p125 = scmp.eq.s32.totalorder %s26, 1
      %p126 = por %p124, %p125
      %p128 = scmp.ne.s32.totalorder %s111, %s127
      %p129 = scmp.eq.s32.totalorder %s26, 0
      %p130 = por %p128, %p129
      %s131 = ssub.s32 %s27, %s46
      %p132 = scmp.eq.s32.totalorder %s131, 0
      %s134 = sadd.s32 %s133, 1
      %s135 = scalar_select %p132, %s133, %s134
      %p138 = pneg %p132
      %p139 = scmp.eq.s32.totalorder %s20, 1
      %p140 = por %p138, %p139
      %p141 = scmp.ne.s32.totalorder %s133, %s136
      %p142 = scmp.eq.s32.totalorder %s20, 0
      %p143 = por %p141, %p142
      %p144 = scmp.ne.s32.totalorder %s133, %s136
      %p145 = scmp.eq.s32.totalorder %s25, 1
      %p146 = por %p144, %p145
      %p147 = scmp.ne.s32.totalorder %s136, %s137
      %p148 = scmp.eq.s32.totalorder %s25, 0
      %p149 = por %p147, %p148
      %p150 = scmp.ne.s32.totalorder %s136, %s137
      %p151 = scmp.eq.s32.totalorder %s26, 1
      %p152 = por %p150, %p151
      %p154 = scmp.ne.s32.totalorder %s137, %s153
      %p155 = scmp.eq.s32.totalorder %s26, 0
      %p156 = por %p154, %p155
      %p157 = scmp.le.s32.totalorder 1, %s20
      %p158 = scmp.lt.s32.totalorder %s20, 3
      %p159 = pnand %p157, %p158
      %p160 = pneg %p159
      // Predicated region
      $region9: #{tpu_custom_call.1} parent=5 // pred_check
        _
      $region10: #{tpu_custom_call.1} parent=5 // pred_check_branch
        %162 = sbr.rel (%p159) target = $region12
      $region11: #{tpu_custom_call.1} parent=5 // pred_region
        %s163 = ssub.s32 %s20, 1
        // Predicated region
        $region13: #{tpu_custom_call.1} parent=11 // pred_check
          %p164 = pneg %p95
        $region14: #{tpu_custom_call.1} parent=11 // pred_check_branch
          %166 = sbr.rel (%p164) target = $region16
        $region15: #{tpu_custom_call.1} parent=11 // pred_region
          %s167 = smul.u32 16, %s32
          %s169 = ssub.s32 1024, 1024
          %170 = vsyncadd [#allocation9], %s169
          %s171 = smul.addr %s167, 64
          %s172 = scalar_lea.hbm %s1, %s171
          %s173 = sshll.u32 [#allocation8], 4
          %s174 = int_to_ptr.vmem [resolvable:$true] %s173
          %179 = dma.hbm_to_vmem [thread:$0]  %s172, 1024, %s174, [#allocation9], 64, 64, 4
        $region16: #{tpu_custom_call.1} parent=11 // pred_fallthru
          _
      $region12: #{tpu_custom_call.1} parent=5 // pred_fallthru
        _
      %p180 = scmp.lt.s32.totalorder %s20, 2
      // Predicated region
      $region17: #{tpu_custom_call.1} parent=5 // pred_check
        %p181 = pneg %p180
      $region18: #{tpu_custom_call.1} parent=5 // pred_check_branch
        %183 = sbr.rel (%p181) target = $region20
      $region19: #{tpu_custom_call.1} parent=5 // pred_region
        // Predicated region
        $region21: #{tpu_custom_call.1} parent=19 // pred_check
          %p184 = pneg %p63
        $region22: #{tpu_custom_call.1} parent=19 // pred_check_branch
          %186 = sbr.rel (%p184) target = $region24
        $region23: #{tpu_custom_call.1} parent=19 // pred_region
          %s187 = sand.u32 %s53, 1
          %s188 = scalar_lea.sflag [#allocation6], %s187
          %s189 = sand.u32 %s53, 1
          %s190 = smul.addr %s189, 32
          %s191 = scalar_lea.vmem [#allocation5], %s190
          %s192 = sadd.s32 %s27, %s28
          %s193 = smul.u32 8, %s192
          %s195 = ssub.s32 512, 512
          %196 = vsyncadd %s188, %s195
          %s197 = sadd.s32 %s29, %s193
          %s198 = smul.addr %s197, 64
          %s199 = scalar_lea.hbm %s0, %s198
          %s200 = sshll.u32 %s191, 4
          %s201 = int_to_ptr.vmem [resolvable:$true] %s200
          %206 = dma.hbm_to_vmem [thread:$0]  %s199, 512, %s201, %s188, 64, 64, 4
        $region24: #{tpu_custom_call.1} parent=19 // pred_fallthru
          _
      $region20: #{tpu_custom_call.1} parent=5 // pred_fallthru
        _
      %p207 = scmp.le.s32.totalorder 1, %s20
      %p208 = scmp.lt.s32.totalorder %s20, 3
      %p209 = pnand %p207, %p208
      %p210 = pneg %p209
      // Predicated region
      $region25: #{tpu_custom_call.1} parent=5 // pred_check
        _
      $region26: #{tpu_custom_call.1} parent=5 // pred_check_branch
        %212 = sbr.rel (%p209) target = $region28
      $region27: #{tpu_custom_call.1} parent=5 // pred_region
        %s213 = ssub.s32 %s20, 1
        %s214 = sand.u32 %s56, 1
        %s215 = scalar_lea.sflag [#allocation6], %s214
        %s216 = sand.u32 %s56, 1
        %s217 = smul.addr %s216, 32
        %s218 = scalar_lea.vmem [#allocation5], %s217
        // Predicated region
        $region29: #{tpu_custom_call.1} parent=27 // pred_check
          %p219 = pneg %p69
        $region30: #{tpu_custom_call.1} parent=27 // pred_check_branch
          %221 = sbr.rel (%p219) target = $region32
        $region31: #{tpu_custom_call.1} parent=27 // pred_region
          %222 = dma.done %s215, 512
        $region32: #{tpu_custom_call.1} parent=27 // pred_fallthru
          _
        // Predicated region
        $region33: #{tpu_custom_call.1} parent=27 // pred_check
          %p223 = pneg %p95
        $region34: #{tpu_custom_call.1} parent=27 // pred_check_branch
          %225 = sbr.rel (%p223) target = $region36
        $region35: #{tpu_custom_call.1} parent=27 // pred_region
          %226 = dma.done [#allocation9], 1024
        $region36: #{tpu_custom_call.1} parent=27 // pred_fallthru
          _
        %s227 = sand.u32 %s56, 1
        %s228 = scalar_lea.sflag [#allocation6], %s227
        %s229 = sand.u32 %s56, 1
        %s230 = smul.addr %s229, 32
        %s231 = scalar_lea.vmem [#allocation5], %s230
        %p232 = pneg %p69
        %p233 = pneg %p66
        %p234 = pneg %p95
        %p235 = pneg %p92
        %p236 = pneg %p123
        %p237 = pneg %p120
        %s238 = sand.u32 %s110, 1
        %s239 = scalar_lea.sflag [#allocation7], %s238
        %s240 = sand.u32 %s110, 1
        %s241 = smul.addr %s240, 32
        %s242 = scalar_lea.vmem [#allocation10], %s241
        %p243 = pneg %p149
        %p244 = pneg %p146
        %s245 = sand.u32 %s136, 1
        %s246 = scalar_lea.sflag [#allocation12], %s245
        %s247 = sand.u32 %s136, 1
        %s248 = smul.addr %s247, 2
        %s249 = scalar_lea.vmem [#allocation11], %s248
        %s250 = sadd.s32 %s30, %s31
        %s251 = smul.u32 8, %s250
        %s252 = smul.u32 16, %s32
        %s253 = sadd.s32 %s30, %s31
        %s254 = smul.u32 8, %s253
        %p256 = scmp.eq.s32.totalorder %s31, 0
        %p257 = scmp.eq.s32.totalorder %s32, 0
        %p258 = pnand %p256, %p257
        %p259 = pneg %p258
        // Predicated region
        $region37: #{tpu_custom_call.1} parent=27 // pred_check
          _
        $region38: #{tpu_custom_call.1} parent=27 // pred_check_branch
          %261 = sbr.rel (%p258) target = $region40
        $region39: #{tpu_custom_call.1} parent=27 // pred_region
          %262 = vst [vmem:[#allocation3] sm:$0x1] 0.0
          %263 = vst [vmem:[#allocation4] sm:$0x1] 0.0
        $region40: #{tpu_custom_call.1} parent=27 // pred_fallthru
          _
        // Predicated region
        $region41: #{tpu_custom_call.1} parent=27 // pred_check
          %p264 = pneg %p257
        $region42: #{tpu_custom_call.1} parent=27 // pred_check_branch
          %266 = sbr.rel (%p264) target = $region44
        $region43: #{tpu_custom_call.1} parent=27 // pred_region
          %267 = vst [vmem:[#allocation2] sm:$0xff] 0.0
          %268 = vst [vmem:[#allocation2 + $0x8] sm:$0xff] 0.0
          %269 = vst [vmem:[#allocation2 + $0x10] sm:$0xff] 0.0
          %270 = vst [vmem:[#allocation2 + $0x18] sm:$0xff] 0.0
          %271 = vst [vmem:[#allocation2 + $0x20] sm:$0xff] 0.0
          %272 = vst [vmem:[#allocation2 + $0x28] sm:$0xff] 0.0
          %273 = vst [vmem:[#allocation2 + $0x30] sm:$0xff] 0.0
          %274 = vst [vmem:[#allocation2 + $0x38] sm:$0xff] 0.0
        $region44: #{tpu_custom_call.1} parent=27 // pred_fallthru
          _
        %v275 = vld [vmem:[#allocation2] sm:$0xff]
        %v276 = vld [vmem:[#allocation2 + $0x8] sm:$0xff]
        %v277 = vld [vmem:[#allocation2 + $0x10] sm:$0xff]
        %v278 = vld [vmem:[#allocation2 + $0x18] sm:$0xff]
        %v279 = vld [vmem:[#allocation2 + $0x20] sm:$0xff]
        %v280 = vld [vmem:[#allocation2 + $0x28] sm:$0xff]
        %v281 = vld [vmem:[#allocation2 + $0x30] sm:$0xff]
        %v282 = vld [vmem:[#allocation2 + $0x38] sm:$0xff]
        %v283 = vld [vmem:[%s218] sm:$0xf]
        %v284 = vld [vmem:[%s218 + $0x4] sm:$0xf]
        %v285 = vld [vmem:[%s218 + $0x8] sm:$0xf]
        %v286 = vld [vmem:[%s218 + $0xc] sm:$0xf]
        %v287 = vld [vmem:[%s218 + $0x10] sm:$0xf]
        %v288 = vld [vmem:[%s218 + $0x14] sm:$0xf]
        %v289 = vld [vmem:[%s218 + $0x18] sm:$0xf]
        %v290 = vld [vmem:[%s218 + $0x1c] sm:$0xf]
        %v291 = vld [vmem:[#allocation8] sm:$0xf]
        %v292 = vld [vmem:[#allocation8 + $0x4] sm:$0xf]
        %v293 = vld [vmem:[#allocation8 + $0x8] sm:$0xf]
        %v294 = vld [vmem:[#allocation8 + $0xc] sm:$0xf]
        %v295 = vld [vmem:[#allocation8 + $0x10] sm:$0xf]
        %v296 = vld [vmem:[#allocation8 + $0x14] sm:$0xf]
        %v297 = vld [vmem:[#allocation8 + $0x18] sm:$0xf]
        %v298 = vld [vmem:[#allocation8 + $0x1c] sm:$0xf]
        %v299 = vld [vmem:[#allocation8 + $0x20] sm:$0xf]
        %v300 = vld [vmem:[#allocation8 + $0x24] sm:$0xf]
        %v301 = vld [vmem:[#allocation8 + $0x28] sm:$0xf]
        %v302 = vld [vmem:[#allocation8 + $0x2c] sm:$0xf]
        %v303 = vld [vmem:[#allocation8 + $0x30] sm:$0xf]
        %v304 = vld [vmem:[#allocation8 + $0x34] sm:$0xf]
        %v305 = vld [vmem:[#allocation8 + $0x38] sm:$0xf]
        %v306 = vld [vmem:[#allocation8 + $0x3c] sm:$0xf]
        %v315 = vunpack.c.l.b16 %v283
        %v316 = vunpack.c.l.b16 %v284
        %v317 = vunpack.c.l.b16 %v285
        %v318 = vunpack.c.l.b16 %v286
        %v319 = vunpack.c.l.b16 %v287
        %v320 = vunpack.c.l.b16 %v288
        %v321 = vunpack.c.l.b16 %v289
        %v322 = vunpack.c.l.b16 %v290
        %v323 = vpack.c.b16 %v316, %v315
        %v324 = vpack.c.b16 %v318, %v317
        %v325 = vpack.c.b16 %v320, %v319
        %v326 = vpack.c.b16 %v322, %v321
        %v347 = vunpack.c.l.b16 %v291
        %v348 = vunpack.c.l.b16 %v292
        %v349 = vunpack.c.l.b16 %v293
        %v350 = vunpack.c.l.b16 %v294
        %v351 = vunpack.c.l.b16 %v295
        %v352 = vunpack.c.l.b16 %v296
        %v353 = vunpack.c.l.b16 %v297
        %v354 = vunpack.c.l.b16 %v298
        %v355 = vunpack.c.l.b16 %v299
        %v356 = vunpack.c.l.b16 %v300
        %v357 = vunpack.c.l.b16 %v301
        %v358 = vunpack.c.l.b16 %v302
        %v359 = vunpack.c.l.b16 %v303
        %v360 = vunpack.c.l.b16 %v304
        %v361 = vunpack.c.l.b16 %v305
        %v362 = vunpack.c.l.b16 %v306
        %v363 = vpack.c.b16 %v348, %v347
        %v364 = vpack.c.b16 %v350, %v349
        %v365 = vpack.c.b16 %v352, %v351
        %v366 = vpack.c.b16 %v354, %v353
        %v367 = vpack.c.b16 %v356, %v355
        %v368 = vpack.c.b16 %v358, %v357
        %v369 = vpack.c.b16 %v360, %v359
        %v370 = vpack.c.b16 %v362, %v361
        %379 = vmatprep.subr.bf16.mxu0 0
        %380 = vmatpush1.bf16.msra.mxu0 %v363
        %381 = vmatprep.subr.bf16.mxu0 0
        %382 = vmatpush1.bf16.msra.mxu0 %v364
        %383 = vmatprep.subr.bf16.mxu0 0
        %384 = vmatpush1.bf16.msra.mxu0 %v365
        %385 = vmatprep.subr.bf16.mxu0 0
        %386 = vmatpush1.bf16.msra.mxu0 %v366
        %387 = vmatprep.subr.bf16.mxu0 0
        %388 = vmatpush1.bf16.msra.mxu0 %v367
        %389 = vmatprep.subr.bf16.mxu0 0
        %390 = vmatpush1.bf16.msra.mxu0 %v368
        %391 = vmatprep.subr.bf16.mxu0 0
        %392 = vmatpush1.bf16.msra.mxu0 %v369
        %393 = vmatprep.subr.bf16.mxu0 0
        %394 = vmatpush1.bf16.msra.mxu0 %v370
        %395 = vmatprep.subr.bf16.mxu0 0
        %396 = vmatpush1.bf16.msra.mxu0 0
        %397 = vmatprep.subr.bf16.mxu0 0
        %398 = vmatpush1.bf16.msra.mxu0 0
        %399 = vmatprep.subr.bf16.mxu0 0
        %400 = vmatpush1.bf16.msra.mxu0 0
        %401 = vmatprep.subr.bf16.mxu0 0
        %402 = vmatpush1.bf16.msra.mxu0 0
        %403 = vmatprep.subr.bf16.mxu0 0
        %404 = vmatpush1.bf16.msra.mxu0 0
        %405 = vmatprep.subr.bf16.mxu0 0
        %406 = vmatpush1.bf16.msra.mxu0 0
        %407 = vmatprep.subr.bf16.mxu0 0
        %408 = vmatpush1.bf16.msra.mxu0 0
        %409 = vmatprep.subr.bf16.mxu0 0
        %410 = vmatpush1.bf16.msra.mxu0 0
        %411 = vmatprep.mubr.bf16.mxu0 0
        %412 = vmatmul.mubr.bf16.gmra.mrb[0].mxu0 %v323
        %v413 = vpop.f32.mrb[0].mxu0
        %v414 = vadd.f32 0.0, %v413
        %v415 = vpop.f32.mrb[0].mxu0
        %v416 = vpop.f32.mrb[0].mxu0
        %v417 = vadd.f32 0.0, %v416
        %v418 = vpop.f32.mrb[0].mxu0
        %419 = vmatprep.mubr.bf16.mxu0 0
        %420 = vmatmul.mubr.bf16.gmra.mrb[0].mxu0 %v324
        %v421 = vpop.f32.mrb[0].mxu0
        %v422 = vadd.f32 0.0, %v421
        %v423 = vpop.f32.mrb[0].mxu0
        %v424 = vpop.f32.mrb[0].mxu0
        %v425 = vadd.f32 0.0, %v424
        %v426 = vpop.f32.mrb[0].mxu0
        %427 = vmatprep.mubr.bf16.mxu0 0
        %428 = vmatmul.mubr.bf16.gmra.mrb[0].mxu0 %v325
        %v429 = vpop.f32.mrb[0].mxu0
        %v430 = vadd.f32 0.0, %v429
        %v431 = vpop.f32.mrb[0].mxu0
        %v432 = vpop.f32.mrb[0].mxu0
        %v433 = vadd.f32 0.0, %v432
        %v434 = vpop.f32.mrb[0].mxu0
        %435 = vmatprep.mubr.bf16.mxu0 0
        %436 = vmatmul.mubr.bf16.gmra.mrb[0].mxu0 %v326
        %v437 = vpop.f32.mrb[0].mxu0
        %v438 = vadd.f32 0.0, %v437
        %v439 = vpop.f32.mrb[0].mxu0
        %v440 = vpop.f32.mrb[0].mxu0
        %v441 = vadd.f32 0.0, %v440
        %v442 = vpop.f32.mrb[0].mxu0
        %443 = vdwg.mxu0
        %v444 = vadd.f32 %v275, %v414
        %v445 = vadd.f32 %v276, %v417
        %v446 = vadd.f32 %v277, %v422
        %v447 = vadd.f32 %v278, %v425
        %v448 = vadd.f32 %v279, %v430
        %v449 = vadd.f32 %v280, %v433
        %v450 = vadd.f32 %v281, %v438
        %v451 = vadd.f32 %v282, %v441
        %452 = vst [vmem:[#allocation2] sm:$0xff] %v444
        %453 = vst [vmem:[#allocation2 + $0x8] sm:$0xff] %v445
        %454 = vst [vmem:[#allocation2 + $0x10] sm:$0xff] %v446
        %455 = vst [vmem:[#allocation2 + $0x18] sm:$0xff] %v447
        %456 = vst [vmem:[#allocation2 + $0x20] sm:$0xff] %v448
        %457 = vst [vmem:[#allocation2 + $0x28] sm:$0xff] %v449
        %458 = vst [vmem:[#allocation2 + $0x30] sm:$0xff] %v450
        %459 = vst [vmem:[#allocation2 + $0x38] sm:$0xff] %v451
        // Predicated region
        $region45: #{tpu_custom_call.1} parent=27 // pred_check
          %p460 = pneg %p257
        $region46: #{tpu_custom_call.1} parent=27 // pred_check_branch
          %462 = sbr.rel (%p460) target = $region48
        $region47: #{tpu_custom_call.1} parent=27 // pred_region
          %v463 = vld [vmem:[#allocation2] sm:$0xff]
          %v464 = vld [vmem:[#allocation2 + $0x8] sm:$0xff]
          %v465 = vld [vmem:[#allocation2 + $0x10] sm:$0xff]
          %v466 = vld [vmem:[#allocation2 + $0x18] sm:$0xff]
          %v467 = vld [vmem:[#allocation2 + $0x20] sm:$0xff]
          %v468 = vld [vmem:[#allocation2 + $0x28] sm:$0xff]
          %v469 = vld [vmem:[#allocation2 + $0x30] sm:$0xff]
          %v470 = vld [vmem:[#allocation2 + $0x38] sm:$0xff]
          %v471 = vld [vmem:[#allocation3] sm:$0x1]
          %v472 = vadd.f32 %v463, %v464
          %v473 = vadd.f32 %v472, %v465
          %v474 = vadd.f32 %v473, %v466
          %v475 = vadd.f32 %v474, %v467
          %v476 = vadd.f32 %v475, %v468
          %v477 = vadd.f32 %v476, %v469
          %v478 = vadd.f32 %v477, %v470
          %v479 = vrot.slane %v478, 4
          %v480 = vadd.f32 %v478, %v479
          %v481 = vrot.slane %v480, 2
          %v482 = vadd.f32 %v480, %v481
          %v483 = vrot.slane %v482, 1
          %v484 = vadd.f32 %v482, %v483
          %v485 = vadd.f32 %v471, %v484
          %486 = vst [vmem:[#allocation3] sm:$0x1] %v485
          %v487 = vld [vmem:[#allocation4] sm:$0x1]
          %v488 = vmul.f32 %v463, %v463
          %v489 = vmul.f32 %v464, %v464
          %v490 = vmul.f32 %v465, %v465
          %v491 = vmul.f32 %v466, %v466
          %v492 = vmul.f32 %v467, %v467
          %v493 = vmul.f32 %v468, %v468
          %v494 = vmul.f32 %v469, %v469
          %v495 = vmul.f32 %v470, %v470
          %v496 = vadd.f32 %v488, %v489
          %v497 = vadd.f32 %v496, %v490
          %v498 = vadd.f32 %v497, %v491
          %v499 = vadd.f32 %v498, %v492
          %v500 = vadd.f32 %v499, %v493
          %v501 = vadd.f32 %v500, %v494
          %v502 = vadd.f32 %v501, %v495
          %v503 = vrot.slane %v502, 4
          %v504 = vadd.f32 %v502, %v503
          %v505 = vrot.slane %v504, 2
          %v506 = vadd.f32 %v504, %v505
          %v507 = vrot.slane %v506, 1
          %v508 = vadd.f32 %v506, %v507
          %v509 = vadd.f32 %v487, %v508
          %510 = vst [vmem:[#allocation4] sm:$0x1] %v509
          %v511 = vpack.c.bf16 %v464, %v463
          %v512 = vpack.c.bf16 %v466, %v465
          %v513 = vpack.c.bf16 %v468, %v467
          %v514 = vpack.c.bf16 %v470, %v469
          %v519 = vunpack.c.l.b16 %v511
          %v520 = vunpack.c.h.b16 %v511
          %v521 = vunpack.c.l.b16 %v512
          %v522 = vunpack.c.h.b16 %v512
          %v523 = vunpack.c.l.b16 %v513
          %v524 = vunpack.c.h.b16 %v513
          %v525 = vunpack.c.l.b16 %v514
          %v526 = vunpack.c.h.b16 %v514
          %v527 = vpack.c.b16 %v519, %v519
          %v528 = vpack.c.b16 %v520, %v520
          %v529 = vpack.c.b16 %v521, %v521
          %v530 = vpack.c.b16 %v522, %v522
          %v531 = vpack.c.b16 %v523, %v523
          %v532 = vpack.c.b16 %v524, %v524
          %v533 = vpack.c.b16 %v525, %v525
          %v534 = vpack.c.b16 %v526, %v526
          %543 = vst [vmem:[%s242] sm:$0xf] %v527
          %544 = vst [vmem:[%s242 + $0x4] sm:$0xf] %v528
          %545 = vst [vmem:[%s242 + $0x8] sm:$0xf] %v529
          %546 = vst [vmem:[%s242 + $0xc] sm:$0xf] %v530
          %547 = vst [vmem:[%s242 + $0x10] sm:$0xf] %v531
          %548 = vst [vmem:[%s242 + $0x14] sm:$0xf] %v532
          %549 = vst [vmem:[%s242 + $0x18] sm:$0xf] %v533
          %550 = vst [vmem:[%s242 + $0x1c] sm:$0xf] %v534
        $region48: #{tpu_custom_call.1} parent=27 // pred_fallthru
          _
        // Predicated region
        $region49: #{tpu_custom_call.1} parent=27 // pred_check
          _
        $region50: #{tpu_custom_call.1} parent=27 // pred_check_branch
          %552 = sbr.rel (%p258) target = $region52
        $region51: #{tpu_custom_call.1} parent=27 // pred_region
          %v553 = vld [vmem:[#allocation3] sm:$0x1]
          %554 = vst [vmem:[%s249] sm:$0x1] %v553
          %v555 = vld [vmem:[#allocation4] sm:$0x1]
          %556 = vst [vmem:[%s249 + $0x1] sm:$0x1] %v555
        $region52: #{tpu_custom_call.1} parent=27 // pred_fallthru
          _
        %s557 = sand.u32 %s110, 1
        %s558 = scalar_lea.sflag [#allocation7], %s557
        %s559 = sand.u32 %s110, 1
        %s560 = smul.addr %s559, 32
        %s561 = scalar_lea.vmem [#allocation10], %s560
        %s562 = sand.u32 %s136, 1
        %s563 = scalar_lea.sflag [#allocation12], %s562
        %s564 = sand.u32 %s136, 1
        %s565 = smul.addr %s564, 2
        %s566 = scalar_lea.vmem [#allocation11], %s565
        // Predicated region
        $region53: #{tpu_custom_call.1} parent=27 // pred_check
          %p567 = pneg %p120
        $region54: #{tpu_custom_call.1} parent=27 // pred_check_branch
          %569 = sbr.rel (%p567) target = $region56
        $region55: #{tpu_custom_call.1} parent=27 // pred_region
          %s570 = sadd.s32 %s30, %s31
          %s571 = smul.u32 8, %s570
          %s573 = ssub.s32 512, 512
          %574 = vsyncadd %s558, %s573
          %s575 = smul.addr %s571, 64
          %s576 = scalar_lea.hbm %s2, %s575
          %s577 = sshll.u32 %s561, 4
          %s578 = int_to_ptr.vmem [resolvable:$true] %s577
          %583 = dma.vmem_to_hbm [thread:$0]  %s578, 512, %s576, %s558, 64, 64, 4
        $region56: #{tpu_custom_call.1} parent=27 // pred_fallthru
          _
        // Predicated region
        $region57: #{tpu_custom_call.1} parent=27 // pred_check
          %p584 = pneg %p146
        $region58: #{tpu_custom_call.1} parent=27 // pred_check_branch
          %586 = sbr.rel (%p584) target = $region60
        $region59: #{tpu_custom_call.1} parent=27 // pred_region
          %s588 = ssub.s32 32, 32
          %589 = vsyncadd %s563, %s588
          %s590 = smul.addr %s30, 32
          %s591 = scalar_lea.hbm %s3, %s590
          %s593 = sshll.u32 %s566, 4
          %s594 = int_to_ptr.vmem [resolvable:$true] %s593
          %596 = dma.vmem_to_hbm [thread:$0]  %s594, 32, %s591, %s563
        $region60: #{tpu_custom_call.1} parent=27 // pred_fallthru
          _
      $region28: #{tpu_custom_call.1} parent=5 // pred_fallthru
        _
      %p597 = scmp.le.s32.totalorder 2, %s20
      // Predicated region
      $region61: #{tpu_custom_call.1} parent=5 // pred_check
        %p598 = pneg %p597
      $region62: #{tpu_custom_call.1} parent=5 // pred_check_branch
        %600 = sbr.rel (%p598) target = $region64
      $region63: #{tpu_custom_call.1} parent=5 // pred_region
        %s601 = ssub.s32 %s20, 2
        // Predicated region
        $region65: #{tpu_custom_call.1} parent=63 // pred_check
          %p602 = pneg %p126
        $region66: #{tpu_custom_call.1} parent=63 // pred_check_branch
          %604 = sbr.rel (%p602) target = $region68
        $region67: #{tpu_custom_call.1} parent=63 // pred_region
          %s605 = sand.u32 %s111, 1
          %s606 = scalar_lea.sflag [#allocation7], %s605
          %s607 = sand.u32 %s111, 1
          %s608 = smul.addr %s607, 32
          %s609 = scalar_lea.vmem [#allocation10], %s608
          %610 = dma.done %s606, 512
        $region68: #{tpu_custom_call.1} parent=63 // pred_fallthru
          _
        // Predicated region
        $region69: #{tpu_custom_call.1} parent=63 // pred_check
          %p611 = pneg %p152
        $region70: #{tpu_custom_call.1} parent=63 // pred_check_branch
          %613 = sbr.rel (%p611) target = $region72
        $region71: #{tpu_custom_call.1} parent=63 // pred_region
          %s614 = sand.u32 %s137, 1
          %s615 = scalar_lea.sflag [#allocation12], %s614
          %s616 = sand.u32 %s137, 1
          %s617 = smul.addr %s616, 2
          %s618 = scalar_lea.vmem [#allocation11], %s617
          %619 = dma.done %s615, 32
        $region72: #{tpu_custom_call.1} parent=63 // pred_fallthru
          _
      $region64: #{tpu_custom_call.1} parent=5 // pred_fallthru
        _
    $region6: #{tpu_custom_call.1} parent=1 // loop_footer
      %s24 = sadd.s32 1, %s20
    $region7: #{tpu_custom_call.1} parent=1 // loop_footer_branch
      %19 = sbr.rel target = $region3
    $region8: #{tpu_custom_call.1} parent=1 // loop_exit
      _
    %620 = vsyncpa [#allocation6], 1
    %s621 = scalar_lea.sflag [#allocation6], 1
    %622 = vsyncpa %s621, 1
    %623 = vsyncpa [#allocation9], 1
    %624 = vsyncpa [#allocation7], 1
    %s625 = scalar_lea.sflag [#allocation7], 1
    %626 = vsyncpa %s625, 1
    %627 = vsyncpa [#allocation12], 1
    %s628 = scalar_lea.sflag [#allocation12], 1
    %629 = vsyncpa %s628, 1

</llo_original>
